<compile_context>
chip_gen: v7x
topology: tpu7x:2x2x1
jax: 0.10.0
libtpu: 0.0.40
codegen_flags: <defaults>
</compile_context>

<pallas_src>
import functools

import jax
import jax.numpy as jnp
from jax.experimental import pallas as pl
from jax.experimental.pallas import tpu as pltpu


def _round_up(x, m):
    return ((x + m - 1) // m) * m


# ----------------------------- Pallas kernel --------------------------------
def _widedeep_kernel(xt_ref, xx_ref, xi_ref,
                     w1t_ref, w1x_ref, w1i_ref, w2_ref, wf_ref, b_ref,
                     out_ref, *, h3p, o3p, pred):
    """One batch tile of the fused deep forward (wide is added in the wrapper epilogue).

    xt/xx/xi_ref : (TILE_B, d_tab/d_text/d_img)   per-branch inputs (no HBM concat)
    w1t/w1x/w1i  : (d_*, h3p)     layer-1 weights, each placed in a disjoint lane span
    w2_ref       : (h3p, o3p)     block-diag(wt2, wx2, wi2), lane-padded
    wf_ref       : (o3p, pp)      stacked [wtp; wxp; wip] -> pred_dim, lane-padded
    b_ref        : (3, wmax)      rows: layer-1 bias, layer-2 bias, summed pred bias
    out_ref      : (TILE_B, pred) prediction (masked lane stores; pred << 128)
    """
    f32 = jnp.float32
    cdt = w1t_ref.dtype

    b1 = b_ref[0:1, :h3p]
    b2 = b_ref[1:2, :o3p]
    b_pred = b_ref[2:3, :pred]

    # Layer 1 of all three deep branches. Each weight slab writes a disjoint lane span of the
    # fused hidden state, so summing the three dots reproduces the block-diagonal result
    # without materializing a concatenated activation in HBM.
    h = jnp.dot(xt_ref[...], w1t_ref[...], preferred_element_type=f32)
    h = h + jnp.dot(xx_ref[...], w1x_ref[...], preferred_element_type=f32)
    h = h + jnp.dot(xi_ref[...], w1i_ref[...], preferred_element_type=f32)
    h = jnp.maximum(h + b1, 0.0)

    # Layer 2 of all three deep components (block-diagonal weights, one MXU pass).
    a = jnp.maximum(
        jnp.dot(h.astype(cdt), w2_ref[...], preferred_element_type=f32) + b2, 0.0)

    # Fused prediction layer (sum over the three per-branch Linear(output_dim, pred_dim)).
    p = jnp.dot(a.astype(cdt), wf_ref[...], preferred_element_type=f32)

    out_ref[...] = (p[:, :pred] + b_pred).astype(out_ref.dtype)


# ------------------------------ param packing --------------------------------
def pack_widedeep_params(p, compute_dtype=jnp.bfloat16):
    """Pack the per-branch PyTorch-style weights into fused, lane-padded slabs (done once).

    bf16 is the default compute dtype (halves DMA/VMEM, fast MXU path on v5e/v6e/v7x);
    pass compute_dtype=jnp.float32 for bit-accurate comparisons. Accumulation is always f32.
    """
    f32 = jnp.float32
    wt1, bt1, wx1, bx1, wi1, bi1 = p["wt1"], p["bt1"], p["wx1"], p["bx1"], p["wi1"], p["bi1"]
    wt2, bt2, wx2, bx2, wi2, bi2 = p["wt2"], p["bt2"], p["wx2"], p["bx2"], p["wi2"], p["bi2"]
    wtp, btp, wxp, bxp, wip, bip = p["wtp"], p["btp"], p["wxp"], p["bxp"], p["wip"], p["bip"]

    d_tab, h = wt1.shape
    d_text = wx1.shape[0]
    d_img = wi1.shape[0]
    out = wt2.shape[1]
    pred = wtp.shape[1]

    h3p = _round_up(3 * h, 128)
    o3p = _round_up(3 * out, 128)
    pp = _round_up(pred, 128)
    wmax = max(h3p, o3p, pp)

    # Layer-1 weights: each branch occupies a disjoint lane span of the fused hidden state.
    w1t = jnp.zeros((d_tab, h3p), f32).at[:, 0:h].set(wt1)
    w1x = jnp.zeros((d_text, h3p), f32).at[:, h:2 * h].set(wx1)
    w1i = jnp.zeros((d_img, h3p), f32).at[:, 2 * h:3 * h].set(wi1)

    # Block-diagonal layer-2 weights.
    w2 = jnp.zeros((h3p, o3p), f32)
    w2 = w2.at[0:h, 0:out].set(wt2)
    w2 = w2.at[h:2 * h, out:2 * out].set(wx2)
    w2 = w2.at[2 * h:3 * h, 2 * out:3 * out].set(wi2)

    # Stacked prediction-layer weights: sum of the three branch predictions == one matmul.
    wf = jnp.zeros((o3p, pp), f32)
    wf = wf.at[0:out, 0:pred].set(wtp)
    wf = wf.at[out:2 * out, 0:pred].set(wxp)
    wf = wf.at[2 * out:3 * out, 0:pred].set(wip)

    # Single bias slab (kept f32; padded entries are zero so ReLU keeps pad lanes at 0).
    b_slab = jnp.zeros((3, wmax), f32)
    b_slab = b_slab.at[0, 0:h].set(bt1[0])
    b_slab = b_slab.at[0, h:2 * h].set(bx1[0])
    b_slab = b_slab.at[0, 2 * h:3 * h].set(bi1[0])
    b_slab = b_slab.at[1, 0:out].set(bt2[0])
    b_slab = b_slab.at[1, out:2 * out].set(bx2[0])
    b_slab = b_slab.at[1, 2 * out:3 * out].set(bi2[0])
    b_slab = b_slab.at[2, 0:pred].set((btp + bxp + bip)[0])

    # Wide embedding table: enforce the padding_idx=0 contract locally.
    w_wide = p["w_wide"].astype(f32).at[0].set(0.0)

    return dict(
        w1t=w1t.astype(compute_dtype),
        w1x=w1x.astype(compute_dtype),
        w1i=w1i.astype(compute_dtype),
        w2=w2.astype(compute_dtype),
        wf=wf.astype(compute_dtype),
        b_slab=b_slab,
        w_wide=w_wide,
        b_wide=p["b_wide"].astype(f32),
    )


# ------------------------------ wrapper --------------------------------------
@functools.partial(jax.jit, static_argnames=("tile_b",))
def widedeep_forward(x_wide_idx, x_tab, x_text, x_img, packed, tile_b=512):
    """x_wide_idx: int32 [B, n_wide] indices into the wide embedding (padding_idx=0)."""
    w1t, w1x, w1i = packed["w1t"], packed["w1x"], packed["w1i"]
    w2, wf, b_slab = packed["w2"], packed["wf"], packed["b_slab"]
    w_wide, b_wide = packed["w_wide"], packed["b_wide"]

    B = x_tab.shape[0]
    pred = w_wide.shape[1]
    d_tab, h3p = w1t.shape
    d_text = w1x.shape[0]
    d_img = w1i.shape[0]
    o3p, pp = wf.shape[0], wf.shape[1]
    o3p = w2.shape[1]
    cdt = w1t.dtype

    # Wide component: embedding gather + sum (O(B*n_wide), no dense multi-hot). Added as a
    # tiny fused XLA epilogue after the pallas_call -> no padded wide slab through HBM.
    # TODO(synk): for very large B / hot profiles, fuse this gather into the kernel with
    # PrefetchScalarGridSpec (indices in SMEM, w_wide resident in VMEM).
    wide_out = jnp.take(w_wide, x_wide_idx, axis=0).sum(axis=1) + b_wide   # (B, pred)

    # Batch tiling: tile must be a multiple of 8 (sublane rule) and not exceed padded B.
    tb = min(_round_up(tile_b, 8), _round_up(B, 8))
    bp = _round_up(B, tb)

    xt = x_tab.astype(cdt)
    xx = x_text.astype(cdt)
    xi = x_img.astype(cdt)
    if bp != B:
        pad = ((0, bp - B), (0, 0))
        xt, xx, xi = (jnp.pad(a, pad) for a in (xt, xx, xi))

    kernel = functools.partial(_widedeep_kernel, h3p=h3p, o3p=o3p, pred=pred)

    d_cat = d_tab + d_text + d_img
    w_item = jnp.dtype(cdt).itemsize
    cost = pl.CostEstimate(
        flops=2 * bp * (d_cat * h3p + h3p * o3p + o3p * pp),
        transcendentals=0,
        bytes_accessed=(bp * d_cat * w_item)
        + (d_cat * h3p + h3p * o3p + o3p * pp) * w_item
        + 3 * b_slab.shape[1] * 4
        + bp * pred * 4,
    )

    deep = pl.pallas_call(
        kernel,
        out_shape=jax.ShapeDtypeStruct((bp, pred), jnp.float32),
        grid=(bp // tb,),
        in_specs=[
            pl.BlockSpec((tb, d_tab), lambda i: (i, 0)),       # x_tab   (batch tiled)
            pl.BlockSpec((tb, d_text), lambda i: (i, 0)),      # x_text  (batch tiled)
            pl.BlockSpec((tb, d_img), lambda i: (i, 0)),       # x_img   (batch tiled)
            pl.BlockSpec((d_tab, h3p), lambda i: (0, 0)),      # w1 tab  (VMEM resident)
            pl.BlockSpec((d_text, h3p), lambda i: (0, 0)),     # w1 text
            pl.BlockSpec((d_img, h3p), lambda i: (0, 0)),      # w1 img
            pl.BlockSpec((h3p, o3p), lambda i: (0, 0)),        # w2
            pl.BlockSpec((o3p, pp), lambda i: (0, 0)),         # wf
            pl.BlockSpec(b_slab.shape, lambda i: (0, 0)),      # bias slab
        ],
        out_specs=pl.BlockSpec((tb, pred), lambda i: (i, 0)),  # (B, pred) output, no 128x pad
        compiler_params=pltpu.CompilerParams(
            dimension_semantics=("parallel",),
            vmem_limit_bytes=32 * 1024 * 1024,
        ),
        cost_estimate=cost,
    )(xt, xx, xi, w1t, w1x, w1i, w2, wf, b_slab)

    # wide + deep  (the `_forward_deep` accumulation) — fused elementwise epilogue.
    return deep[:B] + wide_out


# --------------------------- reference (pure JAX) -----------------------------
def widedeep_reference(x_wide_idx, x_tab, x_text, x_img, params):
    w_wide = params["w_wide"]
    emb = jnp.take(w_wide, x_wide_idx, axis=0)            # [B, n_wide, pred_dim]
    wide_out = jnp.sum(emb, axis=1) + params["b_wide"]    # [B, pred_dim]

    def branch(x, w1, b1, w2, b2, wp, bp):
        h = jax.nn.relu(x @ w1 + b1)
        a = jax.nn.relu(h @ w2 + b2)
        return a @ wp + bp

    res = wide_out
    res = res + branch(x_tab, params["wt1"], params["bt1"],
                       params["wt2"], params["bt2"], params["wtp"], params["btp"])
    res = res + branch(x_text, params["wx1"], params["bx1"],
                       params["wx2"], params["bx2"], params["wxp"], params["bxp"])
    res = res + branch(x_img, params["wi1"], params["bi1"],
                       params["wi2"], params["bi2"], params["wip"], params["bip"])
    return res


# ------------------------------- main -----------------------------------------
if __name__ == "__main__":
    key = jax.random.PRNGKey(0)
    ks = jax.random.split(key, 24)

    B = 200          # batch (not a multiple of the batch tile -> exercises padding + grid)
    PRED = 1         # pred_dim (regression / binary)
    WIDE_DIM = 16    # wide vocab size -> embedding table has WIDE_DIM + 1 rows
    N_WIDE = 4       # wide (crossed-column) features per example
    D_TAB, D_TEXT, D_IMG = 16, 24, 48
    H = 32           # hidden size of each deep component MLP
    OUT = 16         # output_dim of each deep component (last-layer activations)

    def init(k, shape, scale=0.1):
        return (scale * jax.random.normal(k, shape)).astype(jnp.float32)

    # Wide: nn.Embedding(WIDE_DIM + 1, PRED, padding_idx=0) + bias(PRED)
    w_wide = init(ks[0], (WIDE_DIM + 1, PRED))
    w_wide = w_wide.at[0].set(0.0)                   # padding_idx = 0
    b_wide = init(ks[1], (1, PRED))

    params = dict(
        w_wide=w_wide, b_wide=b_wide,
        # deeptabular custom component + WideDeep's added Linear(output_dim, pred_dim)
        wt1=init(ks[2], (D_TAB, H)), bt1=init(ks[3], (1, H)),
        wt2=init(ks[4], (H, OUT)),  bt2=init(ks[5], (1, OUT)),
        wtp=init(ks[6], (OUT, PRED)), btp=init(ks[7], (1, PRED)),
        # deeptext custom component + added Linear
        wx1=init(ks[8], (D_TEXT, H)), bx1=init(ks[9], (1, H)),
        wx2=init(ks[10], (H, OUT)),  bx2=init(ks[11], (1, OUT)),
        wxp=init(ks[12], (OUT, PRED)), bxp=init(ks[13], (1, PRED)),
        # deepimage custom component + added Linear
        wi1=init(ks[14], (D_IMG, H)), bi1=init(ks[15], (1, H)),
        wi2=init(ks[16], (H, OUT)),  bi2=jnp.zeros((1, OUT), jnp.float32),
        wip=init(ks[17], (OUT, PRED)), bip=jnp.zeros((1, PRED), jnp.float32),
    )

    x_tab = init(ks[18], (B, D_TAB), 1.0)
    x_text = init(ks[19], (B, D_TEXT), 1.0)
    x_img = init(ks[20], (B, D_IMG), 1.0)
    x_wide_idx = jax.random.randint(ks[21], (B, N_WIDE), 0, WIDE_DIM + 1)

    ref = widedeep_reference(x_wide_idx, x_tab, x_text, x_img, params)

    # --- f32 compute path, small tile (exercises multi-step grid + batch padding) ---
    packed_f32 = pack_widedeep_params(params, compute_dtype=jnp.float32)
    out = widedeep_forward(x_wide_idx, x_tab, x_text, x_img, packed_f32, tile_b=64)
    out = jax.block_until_ready(out)
    assert out.shape == (B, PRED), out.shape
    assert jnp.allclose(out, ref, atol=1e-4, rtol=1e-4), (out, ref)

    # --- bf16 (default) compute path, default tile (single-shot grid), loose check ---
    packed_bf16 = pack_widedeep_params(params)          # bf16 default for v5e/v6e/v7x MXU
    out_bf16 = widedeep_forward(x_wide_idx, x_tab, x_text, x_img, packed_bf16)
    out_bf16 = jax.block_until_ready(out_bf16)
    assert out_bf16.shape == (B, PRED)
    assert jnp.max(jnp.abs(out_bf16 - ref)) < 1e-1

    # TODO(synk): optional deephead / FC-head (dropout, batchnorm), FDS layer, TabNet M_loss
    # and enforce_positive activation paths are not exercised by this (deephead=None,
    # with_fds=False, enforce_positive=False) configuration.
    print("KERNEL_OK")
</pallas_src>

<mosaic_0001>
module attributes {stable_mosaic.version = 11 : i64} {
  func.func @_widedeep_kernel(%arg0: i32, %arg1: memref<64x16xf32, #tpu.memory_space<vmem>>, %arg2: memref<64x24xf32, #tpu.memory_space<vmem>>, %arg3: memref<64x48xf32, #tpu.memory_space<vmem>>, %arg4: memref<16x128xf32, #tpu.memory_space<vmem>>, %arg5: memref<24x128xf32, #tpu.memory_space<vmem>>, %arg6: memref<48x128xf32, #tpu.memory_space<vmem>>, %arg7: memref<128x128xf32, #tpu.memory_space<vmem>>, %arg8: memref<128x128xf32, #tpu.memory_space<vmem>>, %arg9: memref<3x128xf32, #tpu.memory_space<vmem>>, %arg10: memref<64x1xf32, #tpu.memory_space<vmem>>) attributes {dimension_semantics = [#tpu.dimension_semantics<parallel>], iteration_bounds = array<i64: 4>, scalar_prefetch = 0 : i64, scratch_operands = 0 : i64, tpu.core_type = #tpu.core_type<tc>, window_params = [{transform_indices = @transform_0, window_bounds = array<i64: 64, 16>}, {transform_indices = @transform_1, window_bounds = array<i64: 64, 24>}, {transform_indices = @transform_2, window_bounds = array<i64: 64, 48>}, {pipeline_mode = #tpu.pipeline_mode<synchronous>, transform_indices = @transform_3, window_bounds = array<i64: 16, 128>}, {pipeline_mode = #tpu.pipeline_mode<synchronous>, transform_indices = @transform_4, window_bounds = array<i64: 24, 128>}, {pipeline_mode = #tpu.pipeline_mode<synchronous>, transform_indices = @transform_5, window_bounds = array<i64: 48, 128>}, {pipeline_mode = #tpu.pipeline_mode<synchronous>, transform_indices = @transform_6, window_bounds = array<i64: 128, 128>}, {pipeline_mode = #tpu.pipeline_mode<synchronous>, transform_indices = @transform_7, window_bounds = array<i64: 128, 128>}, {pipeline_mode = #tpu.pipeline_mode<synchronous>, transform_indices = @transform_8, window_bounds = array<i64: 3, 128>}, {transform_indices = @transform_9, window_bounds = array<i64: 64, 1>}]} {
    %c0 = arith.constant 0 : index
    %c0_0 = arith.constant 0 : index
    %0 = vector.load %arg9[%c0, %c0_0] : memref<3x128xf32, #tpu.memory_space<vmem>>, vector<1x128xf32>
    %c1 = arith.constant 1 : index
    %c0_1 = arith.constant 0 : index
    %1 = vector.load %arg9[%c1, %c0_1] : memref<3x128xf32, #tpu.memory_space<vmem>>, vector<1x128xf32>
    %c2 = arith.constant 2 : index
    %c0_2 = arith.constant 0 : index
    %2 = vector.load %arg9[%c2, %c0_2] : memref<3x128xf32, #tpu.memory_space<vmem>>, vector<1x1xf32>
    %c0_3 = arith.constant 0 : index
    %c0_4 = arith.constant 0 : index
    %3 = vector.load %arg1[%c0_3, %c0_4] : memref<64x16xf32, #tpu.memory_space<vmem>>, vector<64x16xf32>
    %c0_5 = arith.constant 0 : index
    %c0_6 = arith.constant 0 : index
    %4 = vector.load %arg4[%c0_5, %c0_6] : memref<16x128xf32, #tpu.memory_space<vmem>>, vector<16x128xf32>
    %cst = arith.constant dense<0.000000e+00> : vector<64x128xf32>
    %5 = tpu.matmul %3, %4, %cst {dimension_numbers = #tpu.dot_dimension_numbers<[1], [0], [0], [1], [0, 0, 1, 1], [], []>} : vector<64x16xf32>, vector<16x128xf32>, vector<64x128xf32> -> vector<64x128xf32>
    %c0_7 = arith.constant 0 : index
    %c0_8 = arith.constant 0 : index
    %6 = vector.load %arg2[%c0_7, %c0_8] : memref<64x24xf32, #tpu.memory_space<vmem>>, vector<64x24xf32>
    %c0_9 = arith.constant 0 : index
    %c0_10 = arith.constant 0 : index
    %7 = vector.load %arg5[%c0_9, %c0_10] : memref<24x128xf32, #tpu.memory_space<vmem>>, vector<24x128xf32>
    %cst_11 = arith.constant dense<0.000000e+00> : vector<64x128xf32>
    %8 = tpu.matmul %6, %7, %cst_11 {dimension_numbers = #tpu.dot_dimension_numbers<[1], [0], [0], [1], [0, 0, 1, 1], [], []>} : vector<64x24xf32>, vector<24x128xf32>, vector<64x128xf32> -> vector<64x128xf32>
    %9 = arith.addf %5, %8 : vector<64x128xf32>
    %c0_12 = arith.constant 0 : index
    %c0_13 = arith.constant 0 : index
    %10 = vector.load %arg3[%c0_12, %c0_13] : memref<64x48xf32, #tpu.memory_space<vmem>>, vector<64x48xf32>
    %c0_14 = arith.constant 0 : index
    %c0_15 = arith.constant 0 : index
    %11 = vector.load %arg6[%c0_14, %c0_15] : memref<48x128xf32, #tpu.memory_space<vmem>>, vector<48x128xf32>
    %cst_16 = arith.constant dense<0.000000e+00> : vector<64x128xf32>
    %12 = tpu.matmul %10, %11, %cst_16 {dimension_numbers = #tpu.dot_dimension_numbers<[1], [0], [0], [1], [0, 0, 1, 1], [], []>} : vector<64x48xf32>, vector<48x128xf32>, vector<64x128xf32> -> vector<64x128xf32>
    %13 = arith.addf %9, %12 : vector<64x128xf32>
    %14 = vector.broadcast %0 : vector<1x128xf32> to vector<64x128xf32>
    %15 = arith.addf %13, %14 : vector<64x128xf32>
    %cst_17 = arith.constant 0.000000e+00 : f32
    %16 = vector.broadcast %cst_17 : f32 to vector<64x128xf32>
    %17 = arith.maximumf %15, %16 : vector<64x128xf32>
    %c0_18 = arith.constant 0 : index
    %c0_19 = arith.constant 0 : index
    %18 = vector.load %arg7[%c0_18, %c0_19] : memref<128x128xf32, #tpu.memory_space<vmem>>, vector<128x128xf32>
    %cst_20 = arith.constant dense<0.000000e+00> : vector<64x128xf32>
    %19 = tpu.matmul %17, %18, %cst_20 {dimension_numbers = #tpu.dot_dimension_numbers<[1], [0], [0], [1], [0, 0, 1, 1], [], []>} : vector<64x128xf32>, vector<128x128xf32>, vector<64x128xf32> -> vector<64x128xf32>
    %20 = vector.broadcast %1 : vector<1x128xf32> to vector<64x128xf32>
    %21 = arith.addf %19, %20 : vector<64x128xf32>
    %cst_21 = arith.constant 0.000000e+00 : f32
    %22 = vector.broadcast %cst_21 : f32 to vector<64x128xf32>
    %23 = arith.maximumf %21, %22 : vector<64x128xf32>
    %c0_22 = arith.constant 0 : index
    %c0_23 = arith.constant 0 : index
    %24 = vector.load %arg8[%c0_22, %c0_23] : memref<128x128xf32, #tpu.memory_space<vmem>>, vector<128x128xf32>
    %cst_24 = arith.constant dense<0.000000e+00> : vector<64x128xf32>
    %25 = tpu.matmul %23, %24, %cst_24 {dimension_numbers = #tpu.dot_dimension_numbers<[1], [0], [0], [1], [0, 0, 1, 1], [], []>} : vector<64x128xf32>, vector<128x128xf32>, vector<64x128xf32> -> vector<64x128xf32>
    %26 = vector.extract_strided_slice %25 {offsets = [0, 0], sizes = [64, 1], strides = [1, 1]} : vector<64x128xf32> to vector<64x1xf32>
    %27 = vector.broadcast %2 : vector<1x1xf32> to vector<64x1xf32>
    %28 = arith.addf %26, %27 : vector<64x1xf32>
    %c0_25 = arith.constant 0 : index
    %c0_26 = arith.constant 0 : index
    %29 = vector.load %arg10[%c0_25, %c0_26] : memref<64x1xf32, #tpu.memory_space<vmem>>, vector<64x1xf32>
    tpu.vector_store %arg10[%c0_25, %c0_26], %28 {strides = array<i32>} : memref<64x1xf32, #tpu.memory_space<vmem>>, vector<64x1xf32>,
    return
  }
  func.func @transform_0(%arg0: i32) -> (i32, i32) {
    %c0_i32 = arith.constant 0 : i32
    %c0_i32_0 = arith.constant 0 : i32
    return %arg0, %c0_i32 : i32, i32
  }
  func.func @transform_1(%arg0: i32) -> (i32, i32) {
    %c0_i32 = arith.constant 0 : i32
    %c0_i32_0 = arith.constant 0 : i32
    return %arg0, %c0_i32 : i32, i32
  }
  func.func @transform_2(%arg0: i32) -> (i32, i32) {
    %c0_i32 = arith.constant 0 : i32
    %c0_i32_0 = arith.constant 0 : i32
    return %arg0, %c0_i32 : i32, i32
  }
  func.func @transform_3(%arg0: i32) -> (i32, i32) {
    %c0_i32 = arith.constant 0 : i32
    %c0_i32_0 = arith.constant 0 : i32
    %c0_i32_1 = arith.constant 0 : i32
    return %c0_i32, %c0_i32_0 : i32, i32
  }
  func.func @transform_4(%arg0: i32) -> (i32, i32) {
    %c0_i32 = arith.constant 0 : i32
    %c0_i32_0 = arith.constant 0 : i32
    %c0_i32_1 = arith.constant 0 : i32
    return %c0_i32, %c0_i32_0 : i32, i32
  }
  func.func @transform_5(%arg0: i32) -> (i32, i32) {
    %c0_i32 = arith.constant 0 : i32
    %c0_i32_0 = arith.constant 0 : i32
    %c0_i32_1 = arith.constant 0 : i32
    return %c0_i32, %c0_i32_0 : i32, i32
  }
  func.func @transform_6(%arg0: i32) -> (i32, i32) {
    %c0_i32 = arith.constant 0 : i32
    %c0_i32_0 = arith.constant 0 : i32
    %c0_i32_1 = arith.constant 0 : i32
    return %c0_i32, %c0_i32_0 : i32, i32
  }
  func.func @transform_7(%arg0: i32) -> (i32, i32) {
    %c0_i32 = arith.constant 0 : i32
    %c0_i32_0 = arith.constant 0 : i32
    %c0_i32_1 = arith.constant 0 : i32
    return %c0_i32, %c0_i32_0 : i32, i32
  }
  func.func @transform_8(%arg0: i32) -> (i32, i32) {
    %c0_i32 = arith.constant 0 : i32
    %c0_i32_0 = arith.constant 0 : i32
    %c0_i32_1 = arith.constant 0 : i32
    return %c0_i32, %c0_i32_0 : i32, i32
  }
  func.func @transform_9(%arg0: i32) -> (i32, i32) {
    %c0_i32 = arith.constant 0 : i32
    %c0_i32_0 = arith.constant 0 : i32
    return %arg0, %c0_i32 : i32, i32
  }
}

</mosaic_0001>

<llo_original>
// kernel: widedeep_forward.1
$region0: #{widedeep_forward.1}
  #allocation0 [shape = 'u32[]', space=smem, size = 0x4, offset = 0x4, fixed_abs, tag = 'smem constant byte address 0x4 - core index']
  #allocation1 [shape = 'u32[144,128]{1,0:T(1,128)}', space=vmem, size = 0x12000, scoped, tag = 'internal scratch']
  %s0 = inlined_call_operand.vmem [shape: f32[256,16], index: 0, kind: input, shape index: {}]
  %s1 = inlined_call_operand.vmem [shape: f32[256,24], index: 1, kind: input, shape index: {}]
  %s2 = inlined_call_operand.vmem [shape: f32[256,48], index: 2, kind: input, shape index: {}]
  %s3 = inlined_call_operand.vmem [shape: f32[16,128], index: 3, kind: input, shape index: {}]
  %s4 = inlined_call_operand.vmem [shape: f32[24,128], index: 4, kind: input, shape index: {}]
  %s5 = inlined_call_operand.vmem [shape: f32[48,128], index: 5, kind: input, shape index: {}]
  %s6 = inlined_call_operand.vmem [shape: f32[128,128], index: 6, kind: input, shape index: {}]
  %s7 = inlined_call_operand.vmem [shape: f32[128,128], index: 7, kind: input, shape index: {}]
  %s8 = inlined_call_operand.vmem [shape: f32[3,128], index: 8, kind: input, shape index: {}]
  %s9 = inlined_call_operand.vmem [shape: f32[256,1], index: 9, kind: output, shape index: {}]
  %s10 = sld [smem:[#allocation0]]
  $region69: #{widedeep_forward.1} parent=0
    _
  %s12 = ssub.s32 1, %s10
  %s13 = scalar_select 0, %s12, %s10
  loop: start=0, step=1, limit=6
  $region2: #{widedeep_forward.1} parent=0 // loop_pre_header
    _
  $region3: #{widedeep_forward.1} parent=0 // loop_header
    %s15 = sphi 0, %s19
    %p16 = scmp.ge.s32.totalorder %s15, 6
    %s25 = sphi 0, %s27
    %s28 = sphi 0, %s25
    %s29 = sphi 0, %s28
    %s45 = sphi 0, %s29
    %s51 = sphi 0, %s53
    %s54 = sphi 0, %s51
    %s55 = sphi 0, %s54
    %s71 = sphi 0, %s55
    %s77 = sphi 0, %s79
    %s80 = sphi 0, %s77
    %s81 = sphi 0, %s80
    %s97 = sphi 0, %s81
    %s101 = sphi 0, %s101
    %s103 = sphi 0, %s101
    %s104 = sphi 0, %s103
    %s118 = sphi 0, %s104
    %s122 = sphi 0, %s122
    %s124 = sphi 0, %s122
    %s125 = sphi 0, %s124
    %s139 = sphi 0, %s125
    %s143 = sphi 0, %s143
    %s145 = sphi 0, %s143
    %s146 = sphi 0, %s145
    %s160 = sphi 0, %s146
    %s164 = sphi 0, %s164
    %s166 = sphi 0, %s164
    %s167 = sphi 0, %s166
    %s181 = sphi 0, %s167
    %s185 = sphi 0, %s185
    %s187 = sphi 0, %s185
    %s188 = sphi 0, %s187
    %s202 = sphi 0, %s188
    %s206 = sphi 0, %s206
    %s208 = sphi 0, %s206
    %s209 = sphi 0, %s208
    %s223 = sphi 0, %s209
    %s229 = sphi 0, %s231
    %s232 = sphi 0, %s229
    %s233 = sphi 0, %s232
    %s249 = sphi 0, %s233
  $region4: #{widedeep_forward.1} parent=0 // loop_header_branch
    %18 = sbr.rel (%p16) target = $region8
  $region5: #{widedeep_forward.1} parent=0 // loop_body
    %s20 = ssub.s32 %s15, 1
    %s21 = ssub.s32 %s15, 2
    %s22 = sadd.s32 %s15, 1
    %s23 = ssub.s32 %s15, %s22
    %p24 = scmp.eq.s32.totalorder %s23, 0
    %s26 = sadd.s32 %s25, 1
    %s27 = scalar_select %p24, %s25, %s26
    %p30 = pneg %p24
    %p31 = scmp.eq.s32.totalorder %s15, 3
    %p32 = por %p30, %p31
    %p33 = scmp.ne.s32.totalorder %s25, %s28
    %p34 = scmp.eq.s32.totalorder %s15, 0
    %p35 = por %p33, %p34
    %p36 = scmp.ne.s32.totalorder %s25, %s28
    %p37 = scmp.eq.s32.totalorder %s20, 3
    %p38 = por %p36, %p37
    %p39 = scmp.ne.s32.totalorder %s28, %s29
    %p40 = scmp.eq.s32.totalorder %s20, 0
    %p41 = por %p39, %p40
    %p42 = scmp.ne.s32.totalorder %s28, %s29
    %p43 = scmp.eq.s32.totalorder %s21, 3
    %p44 = por %p42, %p43
    %p46 = scmp.ne.s32.totalorder %s29, %s45
    %p47 = scmp.eq.s32.totalorder %s21, 0
    %p48 = por %p46, %p47
    %s49 = ssub.s32 %s15, %s22
    %p50 = scmp.eq.s32.totalorder %s49, 0
    %s52 = sadd.s32 %s51, 1
    %s53 = scalar_select %p50, %s51, %s52
    %p56 = pneg %p50
    %p57 = scmp.eq.s32.totalorder %s15, 3
    %p58 = por %p56, %p57
    %p59 = scmp.ne.s32.totalorder %s51, %s54
    %p60 = scmp.eq.s32.totalorder %s15, 0
    %p61 = por %p59, %p60
    %p62 = scmp.ne.s32.totalorder %s51, %s54
    %p63 = scmp.eq.s32.totalorder %s20, 3
    %p64 = por %p62, %p63
    %p65 = scmp.ne.s32.totalorder %s54, %s55
    %p66 = scmp.eq.s32.totalorder %s20, 0
    %p67 = por %p65, %p66
    %p68 = scmp.ne.s32.totalorder %s54, %s55
    %p69 = scmp.eq.s32.totalorder %s21, 3
    %p70 = por %p68, %p69
    %p72 = scmp.ne.s32.totalorder %s55, %s71
    %p73 = scmp.eq.s32.totalorder %s21, 0
    %p74 = por %p72, %p73
    %s75 = ssub.s32 %s15, %s22
    %p76 = scmp.eq.s32.totalorder %s75, 0
    %s78 = sadd.s32 %s77, 1
    %s79 = scalar_select %p76, %s77, %s78
    %p82 = pneg %p76
    %p83 = scmp.eq.s32.totalorder %s15, 3
    %p84 = por %p82, %p83
    %p85 = scmp.ne.s32.totalorder %s77, %s80
    %p86 = scmp.eq.s32.totalorder %s15, 0
    %p87 = por %p85, %p86
    %p88 = scmp.ne.s32.totalorder %s77, %s80
    %p89 = scmp.eq.s32.totalorder %s20, 3
    %p90 = por %p88, %p89
    %p91 = scmp.ne.s32.totalorder %s80, %s81
    %p92 = scmp.eq.s32.totalorder %s20, 0
    %p93 = por %p91, %p92
    %p94 = scmp.ne.s32.totalorder %s80, %s81
    %p95 = scmp.eq.s32.totalorder %s21, 3
    %p96 = por %p94, %p95
    %p98 = scmp.ne.s32.totalorder %s81, %s97
    %p99 = scmp.eq.s32.totalorder %s21, 0
    %p100 = por %p98, %p99
    %s102 = sadd.s32 %s101, 1
    %p105 = scmp.eq.s32.totalorder %s15, 3
    %p106 = scmp.ne.s32.totalorder %s101, %s103
    %p107 = scmp.eq.s32.totalorder %s15, 0
    %p108 = por %p106, %p107
    %p109 = scmp.ne.s32.totalorder %s101, %s103
    %p110 = scmp.eq.s32.totalorder %s20, 3
    %p111 = por %p109, %p110
    %p112 = scmp.ne.s32.totalorder %s103, %s104
    %p113 = scmp.eq.s32.totalorder %s20, 0
    %p114 = por %p112, %p113
    %p115 = scmp.ne.s32.totalorder %s103, %s104
    %p116 = scmp.eq.s32.totalorder %s21, 3
    %p117 = por %p115, %p116
    %p119 = scmp.ne.s32.totalorder %s104, %s118
    %p120 = scmp.eq.s32.totalorder %s21, 0
    %p121 = por %p119, %p120
    %s123 = sadd.s32 %s122, 1
    %p126 = scmp.eq.s32.totalorder %s15, 3
    %p127 = scmp.ne.s32.totalorder %s122, %s124
    %p128 = scmp.eq.s32.totalorder %s15, 0
    %p129 = por %p127, %p128
    %p130 = scmp.ne.s32.totalorder %s122, %s124
    %p131 = scmp.eq.s32.totalorder %s20, 3
    %p132 = por %p130, %p131
    %p133 = scmp.ne.s32.totalorder %s124, %s125
    %p134 = scmp.eq.s32.totalorder %s20, 0
    %p135 = por %p133, %p134
    %p136 = scmp.ne.s32.totalorder %s124, %s125
    %p137 = scmp.eq.s32.totalorder %s21, 3
    %p138 = por %p136, %p137
    %p140 = scmp.ne.s32.totalorder %s125, %s139
    %p141 = scmp.eq.s32.totalorder %s21, 0
    %p142 = por %p140, %p141
    %s144 = sadd.s32 %s143, 1
    %p147 = scmp.eq.s32.totalorder %s15, 3
    %p148 = scmp.ne.s32.totalorder %s143, %s145
    %p149 = scmp.eq.s32.totalorder %s15, 0
    %p150 = por %p148, %p149
    %p151 = scmp.ne.s32.totalorder %s143, %s145
    %p152 = scmp.eq.s32.totalorder %s20, 3
    %p153 = por %p151, %p152
    %p154 = scmp.ne.s32.totalorder %s145, %s146
    %p155 = scmp.eq.s32.totalorder %s20, 0
    %p156 = por %p154, %p155
    %p157 = scmp.ne.s32.totalorder %s145, %s146
    %p158 = scmp.eq.s32.totalorder %s21, 3
    %p159 = por %p157, %p158
    %p161 = scmp.ne.s32.totalorder %s146, %s160
    %p162 = scmp.eq.s32.totalorder %s21, 0
    %p163 = por %p161, %p162
    %s165 = sadd.s32 %s164, 1
    %p168 = scmp.eq.s32.totalorder %s15, 3
    %p169 = scmp.ne.s32.totalorder %s164, %s166
    %p170 = scmp.eq.s32.totalorder %s15, 0
    %p171 = por %p169, %p170
    %p172 = scmp.ne.s32.totalorder %s164, %s166
    %p173 = scmp.eq.s32.totalorder %s20, 3
    %p174 = por %p172, %p173
    %p175 = scmp.ne.s32.totalorder %s166, %s167
    %p176 = scmp.eq.s32.totalorder %s20, 0
    %p177 = por %p175, %p176
    %p178 = scmp.ne.s32.totalorder %s166, %s167
    %p179 = scmp.eq.s32.totalorder %s21, 3
    %p180 = por %p178, %p179
    %p182 = scmp.ne.s32.totalorder %s167, %s181
    %p183 = scmp.eq.s32.totalorder %s21, 0
    %p184 = por %p182, %p183
    %s186 = sadd.s32 %s185, 1
    %p189 = scmp.eq.s32.totalorder %s15, 3
    %p190 = scmp.ne.s32.totalorder %s185, %s187
    %p191 = scmp.eq.s32.totalorder %s15, 0
    %p192 = por %p190, %p191
    %p193 = scmp.ne.s32.totalorder %s185, %s187
    %p194 = scmp.eq.s32.totalorder %s20, 3
    %p195 = por %p193, %p194
    %p196 = scmp.ne.s32.totalorder %s187, %s188
    %p197 = scmp.eq.s32.totalorder %s20, 0
    %p198 = por %p196, %p197
    %p199 = scmp.ne.s32.totalorder %s187, %s188
    %p200 = scmp.eq.s32.totalorder %s21, 3
    %p201 = por %p199, %p200
    %p203 = scmp.ne.s32.totalorder %s188, %s202
    %p204 = scmp.eq.s32.totalorder %s21, 0
    %p205 = por %p203, %p204
    %s207 = sadd.s32 %s206, 1
    %p210 = scmp.eq.s32.totalorder %s15, 3
    %p211 = scmp.ne.s32.totalorder %s206, %s208
    %p212 = scmp.eq.s32.totalorder %s15, 0
    %p213 = por %p211, %p212
    %p214 = scmp.ne.s32.totalorder %s206, %s208
    %p215 = scmp.eq.s32.totalorder %s20, 3
    %p216 = por %p214, %p215
    %p217 = scmp.ne.s32.totalorder %s208, %s209
    %p218 = scmp.eq.s32.totalorder %s20, 0
    %p219 = por %p217, %p218
    %p220 = scmp.ne.s32.totalorder %s208, %s209
    %p221 = scmp.eq.s32.totalorder %s21, 3
    %p222 = por %p220, %p221
    %p224 = scmp.ne.s32.totalorder %s209, %s223
    %p225 = scmp.eq.s32.totalorder %s21, 0
    %p226 = por %p224, %p225
    %s227 = ssub.s32 %s15, %s22
    %p228 = scmp.eq.s32.totalorder %s227, 0
    %s230 = sadd.s32 %s229, 1
    %s231 = scalar_select %p228, %s229, %s230
    %p234 = pneg %p228
    %p235 = scmp.eq.s32.totalorder %s15, 3
    %p236 = por %p234, %p235
    %p237 = scmp.ne.s32.totalorder %s229, %s232
    %p238 = scmp.eq.s32.totalorder %s15, 0
    %p239 = por %p237, %p238
    %p240 = scmp.ne.s32.totalorder %s229, %s232
    %p241 = scmp.eq.s32.totalorder %s20, 3
    %p242 = por %p240, %p241
    %p243 = scmp.ne.s32.totalorder %s232, %s233
    %p244 = scmp.eq.s32.totalorder %s20, 0
    %p245 = por %p243, %p244
    %p246 = scmp.ne.s32.totalorder %s232, %s233
    %p247 = scmp.eq.s32.totalorder %s21, 3
    %p248 = por %p246, %p247
    %p250 = scmp.ne.s32.totalorder %s233, %s249
    %p251 = scmp.eq.s32.totalorder %s21, 0
    %p252 = por %p250, %p251
    %p253 = scmp.le.s32.totalorder 1, %s15
    %p254 = scmp.lt.s32.totalorder %s15, 5
    %p255 = pnand %p253, %p254
    %p256 = pneg %p255
    // Predicated region
    $region9: #{widedeep_forward.1} parent=5 // pred_check
      _
    $region10: #{widedeep_forward.1} parent=5 // pred_check_branch
      %258 = sbr.rel (%p255) target = $region12
    $region11: #{widedeep_forward.1} parent=5 // pred_region
      %s259 = ssub.s32 %s15, 1
      // Predicated region
      $region13: #{widedeep_forward.1} parent=11 // pred_check
        %p260 = pneg %p114
      $region14: #{widedeep_forward.1} parent=11 // pred_check_branch
        %262 = sbr.rel (%p260) target = $region16
      $region15: #{widedeep_forward.1} parent=11 // pred_region
        _
      $region16: #{widedeep_forward.1} parent=11 // pred_fallthru
        _
      // Predicated region
      $region17: #{widedeep_forward.1} parent=11 // pred_check
        %p263 = pneg %p135
      $region18: #{widedeep_forward.1} parent=11 // pred_check_branch
        %265 = sbr.rel (%p263) target = $region20
      $region19: #{widedeep_forward.1} parent=11 // pred_region
        _
      $region20: #{widedeep_forward.1} parent=11 // pred_fallthru
        _
      // Predicated region
      $region21: #{widedeep_forward.1} parent=11 // pred_check
        %p266 = pneg %p156
      $region22: #{widedeep_forward.1} parent=11 // pred_check_branch
        %268 = sbr.rel (%p266) target = $region24
      $region23: #{widedeep_forward.1} parent=11 // pred_region
        _
      $region24: #{widedeep_forward.1} parent=11 // pred_fallthru
        _
      // Predicated region
      $region25: #{widedeep_forward.1} parent=11 // pred_check
        %p269 = pneg %p177
      $region26: #{widedeep_forward.1} parent=11 // pred_check_branch
        %271 = sbr.rel (%p269) target = $region28
      $region27: #{widedeep_forward.1} parent=11 // pred_region
        _
      $region28: #{widedeep_forward.1} parent=11 // pred_fallthru
        _
      // Predicated region
      $region29: #{widedeep_forward.1} parent=11 // pred_check
        %p272 = pneg %p198
      $region30: #{widedeep_forward.1} parent=11 // pred_check_branch
        %274 = sbr.rel (%p272) target = $region32
      $region31: #{widedeep_forward.1} parent=11 // pred_region
        _
      $region32: #{widedeep_forward.1} parent=11 // pred_fallthru
        _
      // Predicated region
      $region33: #{widedeep_forward.1} parent=11 // pred_check
        %p275 = pneg %p219
      $region34: #{widedeep_forward.1} parent=11 // pred_check_branch
        %277 = sbr.rel (%p275) target = $region36
      $region35: #{widedeep_forward.1} parent=11 // pred_region
        _
      $region36: #{widedeep_forward.1} parent=11 // pred_fallthru
        _
    $region12: #{widedeep_forward.1} parent=5 // pred_fallthru
      _
    %p278 = scmp.lt.s32.totalorder %s15, 4
    // Predicated region
    $region37: #{widedeep_forward.1} parent=5 // pred_check
      %p279 = pneg %p278
    $region38: #{widedeep_forward.1} parent=5 // pred_check_branch
      %281 = sbr.rel (%p279) target = $region40
    $region39: #{widedeep_forward.1} parent=5 // pred_region
      // Predicated region
      $region41: #{widedeep_forward.1} parent=39 // pred_check
        %p282 = pneg %p35
      $region42: #{widedeep_forward.1} parent=39 // pred_check_branch
        %284 = sbr.rel (%p282) target = $region44
      $region43: #{widedeep_forward.1} parent=39 // pred_region
        %s285 = smul.u32 8, %s15
        %p286 = scmp.lt.s32.totalorder %s285, 31
        %s287 = scalar_select %p286, %s285, 31
        %s288 = smul.addr %s287, 8
        %s289 = scalar_lea.vmem %s0, %s288
        %s290 = smul.u32 8, %s15
      $region44: #{widedeep_forward.1} parent=39 // pred_fallthru
        _
      // Predicated region
      $region45: #{widedeep_forward.1} parent=39 // pred_check
        %p291 = pneg %p61
      $region46: #{widedeep_forward.1} parent=39 // pred_check_branch
        %293 = sbr.rel (%p291) target = $region48
      $region47: #{widedeep_forward.1} parent=39 // pred_region
        %s294 = smul.u32 8, %s15
        %p295 = scmp.lt.s32.totalorder %s294, 31
        %s296 = scalar_select %p295, %s294, 31
        %s297 = smul.addr %s296, 8
        %s298 = scalar_lea.vmem %s1, %s297
        %s299 = smul.u32 8, %s15
      $region48: #{widedeep_forward.1} parent=39 // pred_fallthru
        _
      // Predicated region
      $region49: #{widedeep_forward.1} parent=39 // pred_check
        %p300 = pneg %p87
      $region50: #{widedeep_forward.1} parent=39 // pred_check_branch
        %302 = sbr.rel (%p300) target = $region52
      $region51: #{widedeep_forward.1} parent=39 // pred_region
        %s303 = smul.u32 8, %s15
        %p304 = scmp.lt.s32.totalorder %s303, 31
        %s305 = scalar_select %p304, %s303, 31
        %s306 = smul.addr %s305, 8
        %s307 = scalar_lea.vmem %s2, %s306
        %s308 = smul.u32 8, %s15
      $region52: #{widedeep_forward.1} parent=39 // pred_fallthru
        _
    $region40: #{widedeep_forward.1} parent=5 // pred_fallthru
      _
    %p309 = scmp.le.s32.totalorder 1, %s15
    %p310 = scmp.lt.s32.totalorder %s15, 5
    %p311 = pnand %p309, %p310
    %p312 = pneg %p311
    // Predicated region
    $region53: #{widedeep_forward.1} parent=5 // pred_check
      _
    $region54: #{widedeep_forward.1} parent=5 // pred_check_branch
      %314 = sbr.rel (%p311) target = $region56
    $region55: #{widedeep_forward.1} parent=5 // pred_region
      %s315 = ssub.s32 %s15, 1
      %s316 = smul.u32 8, %s20
      %p317 = scmp.lt.s32.totalorder %s316, 31
      %s318 = scalar_select %p317, %s316, 31
      %s319 = smul.addr %s318, 8
      %s320 = scalar_lea.vmem %s0, %s319
      %p321 = pneg %p41
      %p322 = pneg %p38
      %s323 = smul.u32 8, %s20
      %p324 = scmp.lt.s32.totalorder %s323, 31
      %s325 = scalar_select %p324, %s323, 31
      %s326 = smul.addr %s325, 8
      %s327 = scalar_lea.vmem %s1, %s326
      %p328 = pneg %p67
      %p329 = pneg %p64
      %s330 = smul.u32 8, %s20
      %p331 = scmp.lt.s32.totalorder %s330, 31
      %s332 = scalar_select %p331, %s330, 31
      %s333 = smul.addr %s332, 8
      %s334 = scalar_lea.vmem %s2, %s333
      %p335 = pneg %p93
      %p336 = pneg %p90
      %p337 = pneg %p114
      %p338 = pneg %p111
      %p339 = pneg %p135
      %p340 = pneg %p132
      %p341 = pneg %p156
      %p342 = pneg %p153
      %p343 = pneg %p177
      %p344 = pneg %p174
      %p345 = pneg %p198
      %p346 = pneg %p195
      %p347 = pneg %p219
      %p348 = pneg %p216
      %p349 = pneg %p245
      %p350 = pneg %p242
      %s351 = smul.u32 8, %s20
      %p352 = scmp.lt.s32.totalorder %s351, 31
      %s353 = scalar_select %p352, %s351, 31
      %s354 = smul.addr %s353, 8
      %s355 = scalar_lea.vmem %s9, %s354
      %s356 = smul.u32 8, %s20
      %p357 = scmp.lt.s32.totalorder %s356, 31
      %s358 = scalar_select %p357, %s356, 31
      %s359 = smul.addr %s358, 8
      %s360 = scalar_lea.vmem %s0, %s359
      %s361 = smul.u32 8, %s20
      %s362 = smul.u32 8, %s20
      %p363 = scmp.lt.s32.totalorder %s362, 31
      %s364 = scalar_select %p363, %s362, 31
      %s365 = smul.addr %s364, 8
      %s366 = scalar_lea.vmem %s1, %s365
      %s367 = smul.u32 8, %s20
      %s368 = smul.u32 8, %s20
      %p369 = scmp.lt.s32.totalorder %s368, 31
      %s370 = scalar_select %p369, %s368, 31
      %s371 = smul.addr %s370, 8
      %s372 = scalar_lea.vmem %s2, %s371
      %s373 = smul.u32 8, %s20
      %s374 = smul.u32 8, %s20
      %p375 = scmp.lt.s32.totalorder %s374, 31
      %s376 = scalar_select %p375, %s374, 31
      %s377 = smul.addr %s376, 8
      %s378 = scalar_lea.vmem %s9, %s377
      %s379 = smul.u32 8, %s20
      %v380 = vld [vmem:[%s8] sm:$0x1]
      %v381 = vld [vmem:[%s8 + $0x1] sm:$0x1]
      %v382 = vld [vmem:[%s8 + $0x2] sm:$0x1]
      %v383 = vld [vmem:[%s360] sm:$0xff]
      %v384 = vld [vmem:[%s360 + $0x8] sm:$0xff]
      %v385 = vld [vmem:[%s360 + $0x10] sm:$0xff]
      %v386 = vld [vmem:[%s360 + $0x18] sm:$0xff]
      %v387 = vld [vmem:[%s360 + $0x20] sm:$0xff]
      %v388 = vld [vmem:[%s360 + $0x28] sm:$0xff]
      %v389 = vld [vmem:[%s360 + $0x30] sm:$0xff]
      %v390 = vld [vmem:[%s360 + $0x38] sm:$0xff]
      %v391 = vld [vmem:[%s3] sm:$0xff]
      %v392 = vld [vmem:[%s3 + $0x8] sm:$0xff]
      %v393 = vld [vmem:[%s366] sm:$0xff]
      %v394 = vld [vmem:[%s366 + $0x8] sm:$0xff]
      %v395 = vld [vmem:[%s366 + $0x10] sm:$0xff]
      %v396 = vld [vmem:[%s366 + $0x18] sm:$0xff]
      %v397 = vld [vmem:[%s366 + $0x20] sm:$0xff]
      %v398 = vld [vmem:[%s366 + $0x28] sm:$0xff]
      %v399 = vld [vmem:[%s366 + $0x30] sm:$0xff]
      %v400 = vld [vmem:[%s366 + $0x38] sm:$0xff]
      %v401 = vld [vmem:[%s4] sm:$0xff]
      %v402 = vld [vmem:[%s4 + $0x8] sm:$0xff]
      %v403 = vld [vmem:[%s4 + $0x10] sm:$0xff]
      %vm404 = vcmask 195584
      %v406 = vsel %vm404, %v393, 0
      %v409 = vsel %vm404, %v394, 0
      %v412 = vsel %vm404, %v395, 0
      %v415 = vsel %vm404, %v396, 0
      %v418 = vsel %vm404, %v397, 0
      %v421 = vsel %vm404, %v398, 0
      %v424 = vsel %vm404, %v399, 0
      %v427 = vsel %vm404, %v400, 0
      %429 = vmatprep.subr.mxu0 0.0
      %430 = vmatpush1.msra.mxu0 %v401
      %431 = vmatprep.subr.mxu0 0.0
      %432 = vmatpush1.msra.mxu0 %v402
      %433 = vmatprep.subr.mxu0 0.0
      %434 = vmatpush1.msra.mxu0 %v403
      %435 = vmatprep.subr.mxu0 0.0
      %436 = vmatpush1.msra.mxu0 0.0
      %437 = vmatprep.subr.mxu0 0.0
      %438 = vmatpush1.msra.mxu0 0.0
      %439 = vmatprep.subr.mxu0 0.0
      %440 = vmatpush1.msra.mxu0 0.0
      %441 = vmatprep.subr.mxu0 0.0
      %442 = vmatpush1.msra.mxu0 0.0
      %443 = vmatprep.subr.mxu0 0.0
      %444 = vmatpush1.msra.mxu0 0.0
      %445 = vmatprep.subr.mxu0 0.0
      %446 = vmatpush1.msra.mxu0 0.0
      %447 = vmatprep.subr.mxu0 0.0
      %448 = vmatpush1.msra.mxu0 0.0
      %449 = vmatprep.subr.mxu0 0.0
      %450 = vmatpush1.msra.mxu0 0.0
      %451 = vmatprep.subr.mxu0 0.0
      %452 = vmatpush1.msra.mxu0 0.0
      %453 = vmatprep.subr.mxu0 0.0
      %454 = vmatpush1.msra.mxu0 0.0
      %455 = vmatprep.subr.mxu0 0.0
      %456 = vmatpush1.msra.mxu0 0.0
      %457 = vmatprep.subr.mxu0 0.0
      %458 = vmatpush1.msra.mxu0 0.0
      %459 = vmatprep.subr.mxu0 0.0
      %460 = vmatpush1.msra.mxu0 0.0
      %461 = vmatprep.subr.mxu0 0.0
      %462 = vmatpush1.msra.mxu0 0.0
      %463 = vmatprep.subr.mxu0 0.0
      %464 = vmatpush1.msra.mxu0 0.0
      %465 = vmatprep.subr.mxu0 0.0
      %466 = vmatpush1.msra.mxu0 0.0
      %467 = vmatprep.subr.mxu0 0.0
      %468 = vmatpush1.msra.mxu0 0.0
      %469 = vmatprep.subr.mxu0 0.0
      %470 = vmatpush1.msra.mxu0 0.0
      %471 = vmatprep.subr.mxu0 0.0
      %472 = vmatpush1.msra.mxu0 0.0
      %473 = vmatprep.subr.mxu0 0.0
      %474 = vmatpush1.msra.mxu0 0.0
      %475 = vmatprep.subr.mxu0 0.0
      %476 = vmatpush1.msra.mxu0 0.0
      %477 = vmatprep.subr.mxu0 0.0
      %478 = vmatpush1.msra.mxu0 0.0
      %479 = vmatprep.subr.mxu0 0.0
      %480 = vmatpush1.msra.mxu0 0.0
      %481 = vmatprep.subr.mxu0 0.0
      %482 = vmatpush1.msra.mxu0 0.0
      %483 = vmatprep.subr.mxu0 0.0
      %484 = vmatpush1.msra.mxu0 0.0
      %485 = vmatprep.subr.mxu0 0.0
      %486 = vmatpush1.msra.mxu0 0.0
      %487 = vmatprep.subr.mxu0 0.0
      %488 = vmatpush1.msra.mxu0 0.0
      %489 = vmatprep.subr.mxu0 0.0
      %490 = vmatpush1.msra.mxu0 0.0
      %491 = vmatprep.subr.mxu0 0.0
      %492 = vmatpush1.msra.mxu0 0.0
      %493 = vmatprep.mubr.f32.mxu0 0.0
      %494 = vmatmul.mubr.f32.gmra.mrb[0].mxu0 %v406
      %v495 = vpop.f32.mrb[0].mxu0
      %v496 = vadd.f32 0.0, %v495
      %v497 = vpop.f32.mrb[0].mxu0
      %498 = vmatprep.mubr.f32.mxu0 0.0
      %499 = vmatmul.mubr.f32.gmra.mrb[0].mxu0 %v409
      %v500 = vpop.f32.mrb[0].mxu0
      %v501 = vadd.f32 0.0, %v500
      %v502 = vpop.f32.mrb[0].mxu0
      %503 = vmatprep.mubr.f32.mxu0 0.0
      %504 = vmatmul.mubr.f32.gmra.mrb[0].mxu0 %v412
      %v505 = vpop.f32.mrb[0].mxu0
      %v506 = vadd.f32 0.0, %v505
      %v507 = vpop.f32.mrb[0].mxu0
      %508 = vmatprep.mubr.f32.mxu0 0.0
      %509 = vmatmul.mubr.f32.gmra.mrb[0].mxu0 %v415
      %v510 = vpop.f32.mrb[0].mxu0
      %v511 = vadd.f32 0.0, %v510
      %v512 = vpop.f32.mrb[0].mxu0
      %513 = vmatprep.mubr.f32.mxu0 0.0
      %514 = vmatmul.mubr.f32.gmra.mrb[0].mxu0 %v418
      %v515 = vpop.f32.mrb[0].mxu0
      %v516 = vadd.f32 0.0, %v515
      %v517 = vpop.f32.mrb[0].mxu0
      %518 = vmatprep.mubr.f32.mxu0 0.0
      %519 = vmatmul.mubr.f32.gmra.mrb[0].mxu0 %v421
      %v520 = vpop.f32.mrb[0].mxu0
      %v521 = vadd.f32 0.0, %v520
      %v522 = vpop.f32.mrb[0].mxu0
      %523 = vmatprep.mubr.f32.mxu0 0.0
      %524 = vmatmul.mubr.f32.gmra.mrb[0].mxu0 %v424
      %v525 = vpop.f32.mrb[0].mxu0
      %v526 = vadd.f32 0.0, %v525
      %v527 = vpop.f32.mrb[0].mxu0
      %528 = vmatprep.mubr.f32.mxu0 0.0
      %529 = vmatmul.mubr.f32.gmra.mrb[0].mxu0 %v427
      %v530 = vpop.f32.mrb[0].mxu0
      %v531 = vadd.f32 0.0, %v530
      %v532 = vpop.f32.mrb[0].mxu0
      %533 = vdwg.mxu0
      %vm534 = vcmask 130048
      %v536 = vsel %vm534, %v383, 0
      %v539 = vsel %vm534, %v384, 0
      %v542 = vsel %vm534, %v385, 0
      %v545 = vsel %vm534, %v386, 0
      %v548 = vsel %vm534, %v387, 0
      %v551 = vsel %vm534, %v388, 0
      %v554 = vsel %vm534, %v389, 0
      %v557 = vsel %vm534, %v390, 0
      %559 = vmatprep.subr.mxu0 0.0
      %560 = vmatpush1.msra.mxu0 %v391
      %561 = vmatprep.subr.mxu0 0.0
      %562 = vmatpush1.msra.mxu0 %v392
      %563 = vmatprep.subr.mxu0 0.0
      %564 = vmatpush1.msra.mxu0 0.0
      %565 = vmatprep.subr.mxu0 0.0
      %566 = vmatpush1.msra.mxu0 0.0
      %567 = vmatprep.subr.mxu0 0.0
      %568 = vmatpush1.msra.mxu0 0.0
      %569 = vmatprep.subr.mxu0 0.0
      %570 = vmatpush1.msra.mxu0 0.0
      %571 = vmatprep.subr.mxu0 0.0
      %572 = vmatpush1.msra.mxu0 0.0
      %573 = vmatprep.subr.mxu0 0.0
      %574 = vmatpush1.msra.mxu0 0.0
      %575 = vmatprep.subr.mxu0 0.0
      %576 = vmatpush1.msra.mxu0 0.0
      %577 = vmatprep.subr.mxu0 0.0
      %578 = vmatpush1.msra.mxu0 0.0
      %579 = vmatprep.subr.mxu0 0.0
      %580 = vmatpush1.msra.mxu0 0.0
      %581 = vmatprep.subr.mxu0 0.0
      %582 = vmatpush1.msra.mxu0 0.0
      %583 = vmatprep.subr.mxu0 0.0
      %584 = vmatpush1.msra.mxu0 0.0
      %585 = vmatprep.subr.mxu0 0.0
      %586 = vmatpush1.msra.mxu0 0.0
      %587 = vmatprep.subr.mxu0 0.0
      %588 = vmatpush1.msra.mxu0 0.0
      %589 = vmatprep.subr.mxu0 0.0
      %590 = vmatpush1.msra.mxu0 0.0
      %591 = vmatprep.subr.mxu0 0.0
      %592 = vmatpush1.msra.mxu0 0.0
      %593 = vmatprep.subr.mxu0 0.0
      %594 = vmatpush1.msra.mxu0 0.0
      %595 = vmatprep.subr.mxu0 0.0
      %596 = vmatpush1.msra.mxu0 0.0
      %597 = vmatprep.subr.mxu0 0.0
      %598 = vmatpush1.msra.mxu0 0.0
      %599 = vmatprep.subr.mxu0 0.0
      %600 = vmatpush1.msra.mxu0 0.0
      %601 = vmatprep.subr.mxu0 0.0
      %602 = vmatpush1.msra.mxu0 0.0
      %603 = vmatprep.subr.mxu0 0.0
      %604 = vmatpush1.msra.mxu0 0.0
      %605 = vmatprep.subr.mxu0 0.0
      %606 = vmatpush1.msra.mxu0 0.0
      %607 = vmatprep.subr.mxu0 0.0
      %608 = vmatpush1.msra.mxu0 0.0
      %609 = vmatprep.subr.mxu0 0.0
      %610 = vmatpush1.msra.mxu0 0.0
      %611 = vmatprep.subr.mxu0 0.0
      %612 = vmatpush1.msra.mxu0 0.0
      %613 = vmatprep.subr.mxu0 0.0
      %614 = vmatpush1.msra.mxu0 0.0
      %615 = vmatprep.subr.mxu0 0.0
      %616 = vmatpush1.msra.mxu0 0.0
      %617 = vmatprep.subr.mxu0 0.0
      %618 = vmatpush1.msra.mxu0 0.0
      %619 = vmatprep.subr.mxu0 0.0
      %620 = vmatpush1.msra.mxu0 0.0
      %621 = vmatprep.subr.mxu0 0.0
      %622 = vmatpush1.msra.mxu0 0.0
      %623 = vmatprep.mubr.f32.mxu0 0.0
      %624 = vmatmul.mubr.f32.gmra.mrb[0].mxu0 %v536
      %v625 = vpop.f32.mrb[0].mxu0
      %v626 = vadd.f32 %v496, %v625
      %v627 = vpop.f32.mrb[0].mxu0
      %628 = vmatprep.mubr.f32.mxu0 0.0
      %629 = vmatmul.mubr.f32.gmra.mrb[0].mxu0 %v539
      %v630 = vpop.f32.mrb[0].mxu0
      %v631 = vadd.f32 %v501, %v630
      %v632 = vpop.f32.mrb[0].mxu0
      %633 = vmatprep.mubr.f32.mxu0 0.0
      %634 = vmatmul.mubr.f32.gmra.mrb[0].mxu0 %v542
      %v635 = vpop.f32.mrb[0].mxu0
      %v636 = vadd.f32 %v506, %v635
      %v637 = vpop.f32.mrb[0].mxu0
      %638 = vmatprep.mubr.f32.mxu0 0.0
      %639 = vmatmul.mubr.f32.gmra.mrb[0].mxu0 %v545
      %v640 = vpop.f32.mrb[0].mxu0
      %v641 = vadd.f32 %v511, %v640
      %v642 = vpop.f32.mrb[0].mxu0
      %643 = vmatprep.mubr.f32.mxu0 0.0
      %644 = vmatmul.mubr.f32.gmra.mrb[0].mxu0 %v548
      %v645 = vpop.f32.mrb[0].mxu0
      %v646 = vadd.f32 %v516, %v645
      %v647 = vpop.f32.mrb[0].mxu0
      %648 = vmatprep.mubr.f32.mxu0 0.0
      %649 = vmatmul.mubr.f32.gmra.mrb[0].mxu0 %v551
      %v650 = vpop.f32.mrb[0].mxu0
      %v651 = vadd.f32 %v521, %v650
      %v652 = vpop.f32.mrb[0].mxu0
      %653 = vmatprep.mubr.f32.mxu0 0.0
      %654 = vmatmul.mubr.f32.gmra.mrb[0].mxu0 %v554
      %v655 = vpop.f32.mrb[0].mxu0
      %v656 = vadd.f32 %v526, %v655
      %v657 = vpop.f32.mrb[0].mxu0
      %658 = vmatprep.mubr.f32.mxu0 0.0
      %659 = vmatmul.mubr.f32.gmra.mrb[0].mxu0 %v557
      %v660 = vpop.f32.mrb[0].mxu0
      %v661 = vadd.f32 %v531, %v660
      %v662 = vpop.f32.mrb[0].mxu0
      %663 = vdwg.mxu0
      %v664 = vld [vmem:[%s372] sm:$0xff]
      %v665 = vld [vmem:[%s372 + $0x8] sm:$0xff]
      %v666 = vld [vmem:[%s372 + $0x10] sm:$0xff]
      %v667 = vld [vmem:[%s372 + $0x18] sm:$0xff]
      %v668 = vld [vmem:[%s372 + $0x20] sm:$0xff]
      %v669 = vld [vmem:[%s372 + $0x28] sm:$0xff]
      %v670 = vld [vmem:[%s372 + $0x30] sm:$0xff]
      %v671 = vld [vmem:[%s372 + $0x38] sm:$0xff]
      %v672 = vld [vmem:[%s5] sm:$0xff]
      %v673 = vld [vmem:[%s5 + $0x8] sm:$0xff]
      %v674 = vld [vmem:[%s5 + $0x10] sm:$0xff]
      %v675 = vld [vmem:[%s5 + $0x18] sm:$0xff]
      %v676 = vld [vmem:[%s5 + $0x20] sm:$0xff]
      %v677 = vld [vmem:[%s5 + $0x28] sm:$0xff]
      %vm678 = vcmask 392192
      %v680 = vsel %vm678, %v664, 0
      %v683 = vsel %vm678, %v665, 0
      %v686 = vsel %vm678, %v666, 0
      %v689 = vsel %vm678, %v667, 0
      %v692 = vsel %vm678, %v668, 0
      %v695 = vsel %vm678, %v669, 0
      %v698 = vsel %vm678, %v670, 0
      %v701 = vsel %vm678, %v671, 0
      %703 = vmatprep.subr.mxu0 0.0
      %704 = vmatpush1.msra.mxu0 %v672
      %705 = vmatprep.subr.mxu0 0.0
      %706 = vmatpush1.msra.mxu0 %v673
      %707 = vmatprep.subr.mxu0 0.0
      %708 = vmatpush1.msra.mxu0 %v674
      %709 = vmatprep.subr.mxu0 0.0
      %710 = vmatpush1.msra.mxu0 %v675
      %711 = vmatprep.subr.mxu0 0.0
      %712 = vmatpush1.msra.mxu0 %v676
      %713 = vmatprep.subr.mxu0 0.0
      %714 = vmatpush1.msra.mxu0 %v677
      %715 = vmatprep.subr.mxu0 0.0
      %716 = vmatpush1.msra.mxu0 0.0
      %717 = vmatprep.subr.mxu0 0.0
      %718 = vmatpush1.msra.mxu0 0.0
      %719 = vmatprep.subr.mxu0 0.0
      %720 = vmatpush1.msra.mxu0 0.0
      %721 = vmatprep.subr.mxu0 0.0
      %722 = vmatpush1.msra.mxu0 0.0
      %723 = vmatprep.subr.mxu0 0.0
      %724 = vmatpush1.msra.mxu0 0.0
      %725 = vmatprep.subr.mxu0 0.0
      %726 = vmatpush1.msra.mxu0 0.0
      %727 = vmatprep.subr.mxu0 0.0
      %728 = vmatpush1.msra.mxu0 0.0
      %729 = vmatprep.subr.mxu0 0.0
      %730 = vmatpush1.msra.mxu0 0.0
      %731 = vmatprep.subr.mxu0 0.0
      %732 = vmatpush1.msra.mxu0 0.0
      %733 = vmatprep.subr.mxu0 0.0
      %734 = vmatpush1.msra.mxu0 0.0
      %735 = vmatprep.subr.mxu0 0.0
      %736 = vmatpush1.msra.mxu0 0.0
      %737 = vmatprep.subr.mxu0 0.0
      %738 = vmatpush1.msra.mxu0 0.0
      %739 = vmatprep.subr.mxu0 0.0
      %740 = vmatpush1.msra.mxu0 0.0
      %741 = vmatprep.subr.mxu0 0.0
      %742 = vmatpush1.msra.mxu0 0.0
      %743 = vmatprep.subr.mxu0 0.0
      %744 = vmatpush1.msra.mxu0 0.0
      %745 = vmatprep.subr.mxu0 0.0
      %746 = vmatpush1.msra.mxu0 0.0
      %747 = vmatprep.subr.mxu0 0.0
      %748 = vmatpush1.msra.mxu0 0.0
      %749 = vmatprep.subr.mxu0 0.0
      %750 = vmatpush1.msra.mxu0 0.0
      %751 = vmatprep.subr.mxu0 0.0
      %752 = vmatpush1.msra.mxu0 0.0
      %753 = vmatprep.subr.mxu0 0.0
      %754 = vmatpush1.msra.mxu0 0.0
      %755 = vmatprep.subr.mxu0 0.0
      %756 = vmatpush1.msra.mxu0 0.0
      %757 = vmatprep.subr.mxu0 0.0
      %758 = vmatpush1.msra.mxu0 0.0
      %759 = vmatprep.subr.mxu0 0.0
      %760 = vmatpush1.msra.mxu0 0.0
      %761 = vmatprep.subr.mxu0 0.0
      %762 = vmatpush1.msra.mxu0 0.0
      %763 = vmatprep.subr.mxu0 0.0
      %764 = vmatpush1.msra.mxu0 0.0
      %765 = vmatprep.subr.mxu0 0.0
      %766 = vmatpush1.msra.mxu0 0.0
      %767 = vmatprep.mubr.f32.mxu0 0.0
      %768 = vmatmul.mubr.f32.gmra.mrb[0].mxu0 %v680
      %v769 = vpop.f32.mrb[0].mxu0
      %v770 = vadd.f32 0.0, %v769
      %v771 = vpop.f32.mrb[0].mxu0
      %772 = vmatprep.mubr.f32.mxu0 0.0
      %773 = vmatmul.mubr.f32.gmra.mrb[0].mxu0 %v683
      %v774 = vpop.f32.mrb[0].mxu0
      %v775 = vadd.f32 0.0, %v774
      %v776 = vpop.f32.mrb[0].mxu0
      %777 = vmatprep.mubr.f32.mxu0 0.0
      %778 = vmatmul.mubr.f32.gmra.mrb[0].mxu0 %v686
      %v779 = vpop.f32.mrb[0].mxu0
      %v780 = vadd.f32 0.0, %v779
      %v781 = vpop.f32.mrb[0].mxu0
      %782 = vmatprep.mubr.f32.mxu0 0.0
      %783 = vmatmul.mubr.f32.gmra.mrb[0].mxu0 %v689
      %v784 = vpop.f32.mrb[0].mxu0
      %v785 = vadd.f32 0.0, %v784
      %v786 = vpop.f32.mrb[0].mxu0
      %787 = vmatprep.mubr.f32.mxu0 0.0
      %788 = vmatmul.mubr.f32.gmra.mrb[0].mxu0 %v692
      %v789 = vpop.f32.mrb[0].mxu0
      %v790 = vadd.f32 0.0, %v789
      %v791 = vpop.f32.mrb[0].mxu0
      %792 = vmatprep.mubr.f32.mxu0 0.0
      %793 = vmatmul.mubr.f32.gmra.mrb[0].mxu0 %v695
      %v794 = vpop.f32.mrb[0].mxu0
      %v795 = vadd.f32 0.0, %v794
      %v796 = vpop.f32.mrb[0].mxu0
      %797 = vmatprep.mubr.f32.mxu0 0.0
      %798 = vmatmul.mubr.f32.gmra.mrb[0].mxu0 %v698
      %v799 = vpop.f32.mrb[0].mxu0
      %v800 = vadd.f32 0.0, %v799
      %v801 = vpop.f32.mrb[0].mxu0
      %802 = vmatprep.mubr.f32.mxu0 0.0
      %803 = vmatmul.mubr.f32.gmra.mrb[0].mxu0 %v701
      %v804 = vpop.f32.mrb[0].mxu0
      %v805 = vadd.f32 0.0, %v804
      %v806 = vpop.f32.mrb[0].mxu0
      %807 = vdwg.mxu0
      %v808 = vadd.f32 %v626, %v770
      %v809 = vadd.f32 %v631, %v775
      %v810 = vadd.f32 %v636, %v780
      %v811 = vadd.f32 %v641, %v785
      %v812 = vadd.f32 %v646, %v790
      %v813 = vadd.f32 %v651, %v795
      %v814 = vadd.f32 %v656, %v800
      %v815 = vadd.f32 %v661, %v805
      %v816 = vlaneseq
      %v817 = vshrl.u32 %v816, 7
      %v818 = vsub.s32 0, %v817
      %v819 = vrot.slane %v380, %v818
      %v820 = vadd.f32 %v808, %v819
      %v821 = vadd.f32 %v809, %v819
      %v822 = vadd.f32 %v810, %v819
      %v823 = vadd.f32 %v811, %v819
      %v824 = vadd.f32 %v812, %v819
      %v825 = vadd.f32 %v813, %v819
      %v826 = vadd.f32 %v814, %v819
      %v827 = vadd.f32 %v815, %v819
      %v828 = vmax.f32 %v820, 0.0
      %v829 = vmax.f32 %v821, 0.0
      %v830 = vmax.f32 %v822, 0.0
      %v831 = vmax.f32 %v823, 0.0
      %v832 = vmax.f32 %v824, 0.0
      %v833 = vmax.f32 %v825, 0.0
      %v834 = vmax.f32 %v826, 0.0
      %v835 = vmax.f32 %v827, 0.0
      %v836 = vld [vmem:[%s6] sm:$0xff]
      %v837 = vld [vmem:[%s6 + $0x8] sm:$0xff]
      %v838 = vld [vmem:[%s6 + $0x10] sm:$0xff]
      %v839 = vld [vmem:[%s6 + $0x18] sm:$0xff]
      %v840 = vld [vmem:[%s6 + $0x20] sm:$0xff]
      %v841 = vld [vmem:[%s6 + $0x28] sm:$0xff]
      %v842 = vld [vmem:[%s6 + $0x30] sm:$0xff]
      %v843 = vld [vmem:[%s6 + $0x38] sm:$0xff]
      %v844 = vld [vmem:[%s6 + $0x40] sm:$0xff]
      %v845 = vld [vmem:[%s6 + $0x48] sm:$0xff]
      %v846 = vld [vmem:[%s6 + $0x50] sm:$0xff]
      %v847 = vld [vmem:[%s6 + $0x58] sm:$0xff]
      %v848 = vld [vmem:[%s6 + $0x60] sm:$0xff]
      %v849 = vld [vmem:[%s6 + $0x68] sm:$0xff]
      %v850 = vld [vmem:[%s6 + $0x70] sm:$0xff]
      %v851 = vld [vmem:[%s6 + $0x78] sm:$0xff]
      %v852 = vlaneseq
      %v853 = vshrl.u32 %v852, 7
      %v854 = vsub.s32 0, %v853
      %v855 = vrot.slane %v381, %v854
      %856 = vmatprep.subr.mxu0 0.0
      %857 = vmatpush1.msra.mxu0 %v836
      %858 = vmatprep.subr.mxu0 0.0
      %859 = vmatpush1.msra.mxu0 %v837
      %860 = vmatprep.subr.mxu0 0.0
      %861 = vmatpush1.msra.mxu0 %v838
      %862 = vmatprep.subr.mxu0 0.0
      %863 = vmatpush1.msra.mxu0 %v839
      %864 = vmatprep.subr.mxu0 0.0
      %865 = vmatpush1.msra.mxu0 %v840
      %866 = vmatprep.subr.mxu0 0.0
      %867 = vmatpush1.msra.mxu0 %v841
      %868 = vmatprep.subr.mxu0 0.0
      %869 = vmatpush1.msra.mxu0 %v842
      %870 = vmatprep.subr.mxu0 0.0
      %871 = vmatpush1.msra.mxu0 %v843
      %872 = vmatprep.subr.mxu0 0.0
      %873 = vmatpush1.msra.mxu0 %v844
      %874 = vmatprep.subr.mxu0 0.0
      %875 = vmatpush1.msra.mxu0 %v845
      %876 = vmatprep.subr.mxu0 0.0
      %877 = vmatpush1.msra.mxu0 %v846
      %878 = vmatprep.subr.mxu0 0.0
      %879 = vmatpush1.msra.mxu0 %v847
      %880 = vmatprep.subr.mxu0 0.0
      %881 = vmatpush1.msra.mxu0 %v848
      %882 = vmatprep.subr.mxu0 0.0
      %883 = vmatpush1.msra.mxu0 %v849
      %884 = vmatprep.subr.mxu0 0.0
      %885 = vmatpush1.msra.mxu0 %v850
      %886 = vmatprep.subr.mxu0 0.0
      %887 = vmatpush1.msra.mxu0 %v851
      %888 = vmatprep.subr.mxu0 0.0
      %889 = vmatpush1.msra.mxu0 0.0
      %890 = vmatprep.subr.mxu0 0.0
      %891 = vmatpush1.msra.mxu0 0.0
      %892 = vmatprep.subr.mxu0 0.0
      %893 = vmatpush1.msra.mxu0 0.0
      %894 = vmatprep.subr.mxu0 0.0
      %895 = vmatpush1.msra.mxu0 0.0
      %896 = vmatprep.subr.mxu0 0.0
      %897 = vmatpush1.msra.mxu0 0.0
      %898 = vmatprep.subr.mxu0 0.0
      %899 = vmatpush1.msra.mxu0 0.0
      %900 = vmatprep.subr.mxu0 0.0
      %901 = vmatpush1.msra.mxu0 0.0
      %902 = vmatprep.subr.mxu0 0.0
      %903 = vmatpush1.msra.mxu0 0.0
      %904 = vmatprep.subr.mxu0 0.0
      %905 = vmatpush1.msra.mxu0 0.0
      %906 = vmatprep.subr.mxu0 0.0
      %907 = vmatpush1.msra.mxu0 0.0
      %908 = vmatprep.subr.mxu0 0.0
      %909 = vmatpush1.msra.mxu0 0.0
      %910 = vmatprep.subr.mxu0 0.0
      %911 = vmatpush1.msra.mxu0 0.0
      %912 = vmatprep.subr.mxu0 0.0
      %913 = vmatpush1.msra.mxu0 0.0
      %914 = vmatprep.subr.mxu0 0.0
      %915 = vmatpush1.msra.mxu0 0.0
      %916 = vmatprep.subr.mxu0 0.0
      %917 = vmatpush1.msra.mxu0 0.0
      %918 = vmatprep.subr.mxu0 0.0
      %919 = vmatpush1.msra.mxu0 0.0
      %920 = vmatprep.mubr.f32.mxu0 0.0
      %921 = vmatmul.mubr.f32.gmra.mrb[0].mxu0 %v828
      %v922 = vpop.f32.mrb[0].mxu0
      %v923 = vadd.f32 %v855, %v922
      %v924 = vpop.f32.mrb[0].mxu0
      %925 = vmatprep.mubr.f32.mxu0 0.0
      %926 = vmatmul.mubr.f32.gmra.mrb[0].mxu0 %v829
      %v927 = vpop.f32.mrb[0].mxu0
      %v928 = vadd.f32 %v855, %v927
      %v929 = vpop.f32.mrb[0].mxu0
      %930 = vmatprep.mubr.f32.mxu0 0.0
      %931 = vmatmul.mubr.f32.gmra.mrb[0].mxu0 %v830
      %v932 = vpop.f32.mrb[0].mxu0
      %v933 = vadd.f32 %v855, %v932
      %v934 = vpop.f32.mrb[0].mxu0
      %935 = vmatprep.mubr.f32.mxu0 0.0
      %936 = vmatmul.mubr.f32.gmra.mrb[0].mxu0 %v831
      %v937 = vpop.f32.mrb[0].mxu0
      %v938 = vadd.f32 %v855, %v937
      %v939 = vpop.f32.mrb[0].mxu0
      %940 = vmatprep.mubr.f32.mxu0 0.0
      %941 = vmatmul.mubr.f32.gmra.mrb[0].mxu0 %v832
      %v942 = vpop.f32.mrb[0].mxu0
      %v943 = vadd.f32 %v855, %v942
      %v944 = vpop.f32.mrb[0].mxu0
      %945 = vmatprep.mubr.f32.mxu0 0.0
      %946 = vmatmul.mubr.f32.gmra.mrb[0].mxu0 %v833
      %v947 = vpop.f32.mrb[0].mxu0
      %v948 = vadd.f32 %v855, %v947
      %v949 = vpop.f32.mrb[0].mxu0
      %950 = vmatprep.mubr.f32.mxu0 0.0
      %951 = vmatmul.mubr.f32.gmra.mrb[0].mxu0 %v834
      %v952 = vpop.f32.mrb[0].mxu0
      %v953 = vadd.f32 %v855, %v952
      %v954 = vpop.f32.mrb[0].mxu0
      %955 = vmatprep.mubr.f32.mxu0 0.0
      %956 = vmatmul.mubr.f32.gmra.mrb[0].mxu0 %v835
      %v957 = vpop.f32.mrb[0].mxu0
      %v958 = vadd.f32 %v855, %v957
      %v959 = vpop.f32.mrb[0].mxu0
      %960 = vdwg.mxu0
      %v961 = vmax.f32 %v923, 0.0
      %v962 = vmax.f32 %v928, 0.0
      %v963 = vmax.f32 %v933, 0.0
      %v964 = vmax.f32 %v938, 0.0
      %v965 = vmax.f32 %v943, 0.0
      %v966 = vmax.f32 %v948, 0.0
      %v967 = vmax.f32 %v953, 0.0
      %v968 = vmax.f32 %v958, 0.0
      %v969 = vld [vmem:[%s7] sm:$0xff]
      %v970 = vld [vmem:[%s7 + $0x8] sm:$0xff]
      %v971 = vld [vmem:[%s7 + $0x10] sm:$0xff]
      %v972 = vld [vmem:[%s7 + $0x18] sm:$0xff]
      %v973 = vld [vmem:[%s7 + $0x20] sm:$0xff]
      %v974 = vld [vmem:[%s7 + $0x28] sm:$0xff]
      %v975 = vld [vmem:[%s7 + $0x30] sm:$0xff]
      %v976 = vld [vmem:[%s7 + $0x38] sm:$0xff]
      %v977 = vld [vmem:[%s7 + $0x40] sm:$0xff]
      %v978 = vld [vmem:[%s7 + $0x48] sm:$0xff]
      %v979 = vld [vmem:[%s7 + $0x50] sm:$0xff]
      %v980 = vld [vmem:[%s7 + $0x58] sm:$0xff]
      %v981 = vld [vmem:[%s7 + $0x60] sm:$0xff]
      %v982 = vld [vmem:[%s7 + $0x68] sm:$0xff]
      %v983 = vld [vmem:[%s7 + $0x70] sm:$0xff]
      %v984 = vld [vmem:[%s7 + $0x78] sm:$0xff]
      %985 = vmatprep.subr.mxu0 0.0
      %986 = vmatpush1.msra.mxu0 %v969
      %987 = vmatprep.subr.mxu0 0.0
      %988 = vmatpush1.msra.mxu0 %v970
      %989 = vmatprep.subr.mxu0 0.0
      %990 = vmatpush1.msra.mxu0 %v971
      %991 = vmatprep.subr.mxu0 0.0
      %992 = vmatpush1.msra.mxu0 %v972
      %993 = vmatprep.subr.mxu0 0.0
      %994 = vmatpush1.msra.mxu0 %v973
      %995 = vmatprep.subr.mxu0 0.0
      %996 = vmatpush1.msra.mxu0 %v974
      %997 = vmatprep.subr.mxu0 0.0
      %998 = vmatpush1.msra.mxu0 %v975
      %999 = vmatprep.subr.mxu0 0.0
      %1000 = vmatpush1.msra.mxu0 %v976
      %1001 = vmatprep.subr.mxu0 0.0
      %1002 = vmatpush1.msra.mxu0 %v977
      %1003 = vmatprep.subr.mxu0 0.0
      %1004 = vmatpush1.msra.mxu0 %v978
      %1005 = vmatprep.subr.mxu0 0.0
      %1006 = vmatpush1.msra.mxu0 %v979
      %1007 = vmatprep.subr.mxu0 0.0
      %1008 = vmatpush1.msra.mxu0 %v980
      %1009 = vmatprep.subr.mxu0 0.0
      %1010 = vmatpush1.msra.mxu0 %v981
      %1011 = vmatprep.subr.mxu0 0.0
      %1012 = vmatpush1.msra.mxu0 %v982
      %1013 = vmatprep.subr.mxu0 0.0
      %1014 = vmatpush1.msra.mxu0 %v983
      %1015 = vmatprep.subr.mxu0 0.0
      %1016 = vmatpush1.msra.mxu0 %v984
      %1017 = vmatprep.subr.mxu0 0.0
      %1018 = vmatpush1.msra.mxu0 0.0
      %1019 = vmatprep.subr.mxu0 0.0
      %1020 = vmatpush1.msra.mxu0 0.0
      %1021 = vmatprep.subr.mxu0 0.0
      %1022 = vmatpush1.msra.mxu0 0.0
      %1023 = vmatprep.subr.mxu0 0.0
      %1024 = vmatpush1.msra.mxu0 0.0
      %1025 = vmatprep.subr.mxu0 0.0
      %1026 = vmatpush1.msra.mxu0 0.0
      %1027 = vmatprep.subr.mxu0 0.0
      %1028 = vmatpush1.msra.mxu0 0.0
      %1029 = vmatprep.subr.mxu0 0.0
      %1030 = vmatpush1.msra.mxu0 0.0
      %1031 = vmatprep.subr.mxu0 0.0
      %1032 = vmatpush1.msra.mxu0 0.0
      %1033 = vmatprep.subr.mxu0 0.0
      %1034 = vmatpush1.msra.mxu0 0.0
      %1035 = vmatprep.subr.mxu0 0.0
      %1036 = vmatpush1.msra.mxu0 0.0
      %1037 = vmatprep.subr.mxu0 0.0
      %1038 = vmatpush1.msra.mxu0 0.0
      %1039 = vmatprep.subr.mxu0 0.0
      %1040 = vmatpush1.msra.mxu0 0.0
      %1041 = vmatprep.subr.mxu0 0.0
      %1042 = vmatpush1.msra.mxu0 0.0
      %1043 = vmatprep.subr.mxu0 0.0
      %1044 = vmatpush1.msra.mxu0 0.0
      %1045 = vmatprep.subr.mxu0 0.0
      %1046 = vmatpush1.msra.mxu0 0.0
      %1047 = vmatprep.subr.mxu0 0.0
      %1048 = vmatpush1.msra.mxu0 0.0
      %1049 = vmatprep.mubr.f32.mxu0 0.0
      %1050 = vmatmul.mubr.f32.gmra.mrb[0].mxu0 %v961
      %v1051 = vpop.f32.mrb[0].mxu0
      %v1052 = vadd.f32 0.0, %v1051
      %v1053 = vpop.f32.mrb[0].mxu0
      %1054 = vmatprep.mubr.f32.mxu0 0.0
      %1055 = vmatmul.mubr.f32.gmra.mrb[0].mxu0 %v962
      %v1056 = vpop.f32.mrb[0].mxu0
      %v1057 = vadd.f32 0.0, %v1056
      %v1058 = vpop.f32.mrb[0].mxu0
      %1059 = vmatprep.mubr.f32.mxu0 0.0
      %1060 = vmatmul.mubr.f32.gmra.mrb[0].mxu0 %v963
      %v1061 = vpop.f32.mrb[0].mxu0
      %v1062 = vadd.f32 0.0, %v1061
      %v1063 = vpop.f32.mrb[0].mxu0
      %1064 = vmatprep.mubr.f32.mxu0 0.0
      %1065 = vmatmul.mubr.f32.gmra.mrb[0].mxu0 %v964
      %v1066 = vpop.f32.mrb[0].mxu0
      %v1067 = vadd.f32 0.0, %v1066
      %v1068 = vpop.f32.mrb[0].mxu0
      %1069 = vmatprep.mubr.f32.mxu0 0.0
      %1070 = vmatmul.mubr.f32.gmra.mrb[0].mxu0 %v965
      %v1071 = vpop.f32.mrb[0].mxu0
      %v1072 = vadd.f32 0.0, %v1071
      %v1073 = vpop.f32.mrb[0].mxu0
      %1074 = vmatprep.mubr.f32.mxu0 0.0
      %1075 = vmatmul.mubr.f32.gmra.mrb[0].mxu0 %v966
      %v1076 = vpop.f32.mrb[0].mxu0
      %v1077 = vadd.f32 0.0, %v1076
      %v1078 = vpop.f32.mrb[0].mxu0
      %1079 = vmatprep.mubr.f32.mxu0 0.0
      %1080 = vmatmul.mubr.f32.gmra.mrb[0].mxu0 %v967
      %v1081 = vpop.f32.mrb[0].mxu0
      %v1082 = vadd.f32 0.0, %v1081
      %v1083 = vpop.f32.mrb[0].mxu0
      %1084 = vmatprep.mubr.f32.mxu0 0.0
      %1085 = vmatmul.mubr.f32.gmra.mrb[0].mxu0 %v968
      %v1086 = vpop.f32.mrb[0].mxu0
      %v1087 = vadd.f32 0.0, %v1086
      %v1088 = vpop.f32.mrb[0].mxu0
      %1089 = vdwg.mxu0
      %v1090 = vlaneseq
      %v1091 = vshrl.u32 %v1090, 7
      %v1092 = vsub.s32 0, %v1091
      %v1093 = vrot.slane %v382, %v1092
      %v1094 = vadd.f32 %v1052, %v1093
      %v1095 = vadd.f32 %v1057, %v1093
      %v1096 = vadd.f32 %v1062, %v1093
      %v1097 = vadd.f32 %v1067, %v1093
      %v1098 = vadd.f32 %v1072, %v1093
      %v1099 = vadd.f32 %v1077, %v1093
      %v1100 = vadd.f32 %v1082, %v1093
      %v1101 = vadd.f32 %v1087, %v1093
      %vm1102 = vcmask 7168
      %1103 = vst.msk [vmem:[%s378] sm:$0xff] %vm1102, %v1094
      %1104 = vst.msk [vmem:[%s378 + $0x8] sm:$0xff] %vm1102, %v1095
      %1105 = vst.msk [vmem:[%s378 + $0x10] sm:$0xff] %vm1102, %v1096
      %1106 = vst.msk [vmem:[%s378 + $0x18] sm:$0xff] %vm1102, %v1097
      %1107 = vst.msk [vmem:[%s378 + $0x20] sm:$0xff] %vm1102, %v1098
      %1108 = vst.msk [vmem:[%s378 + $0x28] sm:$0xff] %vm1102, %v1099
      %1109 = vst.msk [vmem:[%s378 + $0x30] sm:$0xff] %vm1102, %v1100
      %1110 = vst.msk [vmem:[%s378 + $0x38] sm:$0xff] %vm1102, %v1101
      %s1111 = smul.u32 8, %s20
      %p1112 = scmp.lt.s32.totalorder %s1111, 31
      %s1113 = scalar_select %p1112, %s1111, 31
      %s1114 = smul.addr %s1113, 8
      %s1115 = scalar_lea.vmem %s9, %s1114
      // Predicated region
      $region57: #{widedeep_forward.1} parent=55 // pred_check
        %p1116 = pneg %p242
      $region58: #{widedeep_forward.1} parent=55 // pred_check_branch
        %1118 = sbr.rel (%p1116) target = $region60
      $region59: #{widedeep_forward.1} parent=55 // pred_region
        %s1119 = smul.u32 8, %s20
      $region60: #{widedeep_forward.1} parent=55 // pred_fallthru
        _
    $region56: #{widedeep_forward.1} parent=5 // pred_fallthru
      _
    %p1120 = scmp.le.s32.totalorder 2, %s15
    // Predicated region
    $region61: #{widedeep_forward.1} parent=5 // pred_check
      %p1121 = pneg %p1120
    $region62: #{widedeep_forward.1} parent=5 // pred_check_branch
      %1123 = sbr.rel (%p1121) target = $region64
    $region63: #{widedeep_forward.1} parent=5 // pred_region
      %s1124 = ssub.s32 %s15, 2
      // Predicated region
      $region65: #{widedeep_forward.1} parent=63 // pred_check
        %p1125 = pneg %p248
      $region66: #{widedeep_forward.1} parent=63 // pred_check_branch
        %1127 = sbr.rel (%p1125) target = $region68
      $region67: #{widedeep_forward.1} parent=63 // pred_region
        %s1128 = smul.u32 8, %s21
        %p1129 = scmp.lt.s32.totalorder %s1128, 31
        %s1130 = scalar_select %p1129, %s1128, 31
        %s1131 = smul.addr %s1130, 8
        %s1132 = scalar_lea.vmem %s9, %s1131
      $region68: #{widedeep_forward.1} parent=63 // pred_fallthru
        _
    $region64: #{widedeep_forward.1} parent=5 // pred_fallthru
      _
  $region6: #{widedeep_forward.1} parent=0 // loop_footer
    %s19 = sadd.s32 1, %s15
  $region7: #{widedeep_forward.1} parent=0 // loop_footer_branch
    %14 = sbr.rel target = $region3
  $region8: #{widedeep_forward.1} parent=0 // loop_exit
    _

</llo_original>
